<compile_context>
chip_gen: v5e
topology: v5e:2x2
jax: 0.10.0
libtpu: 0.0.40
codegen_flags: <defaults>
</compile_context>

<pallas_src>
import functools

import jax
import jax.numpy as jnp
from jax.experimental import pallas as pl
from jax.experimental.pallas import tpu as pltpu

BN_EPS = 1e-5
OUT_ROW = 2   # forward() returns y[2]
TB = 8        # timesteps per grid step (multiple of 8 -> sublane-aligned output blocks)


def _align8(v):
    return ((v + 7) // 8) * 8


def _slab_layout(feat, hidden, n_nodes, tb):
    """Row offsets inside the packed parameter slab (all multiples of 8)."""
    lanes = max(2 * hidden, tb * n_nodes)
    r_ab = 0                              # tb rows    : block-diag replication of a_row
    r_cw = _align8(tb)                    # feat rows  : folded conv->gate weights (F, 2H)
    r_w1 = r_cw + _align8(feat)           # hidden rows: BN-folded linear1 (H, H)
    r_vec = r_w1 + _align8(hidden)        # +0 gate bias | +1 b1 (0:H), b2 (lane H) | +2 w2^T
    rows = r_vec + 8
    return r_ab, r_cw, r_w1, r_vec, rows, lanes


def recurrent_gcn_kernel(x_ref, slab_ref, out_ref, *, feat, hidden, n_nodes, tb):
    F, H, N = feat, hidden, n_nodes
    r_ab, r_cw, r_w1, r_vec, _, _ = _slab_layout(F, H, N, tb)

    # Static Ref-level slices: Mosaic issues only the vlds actually needed.
    a_blk = slab_ref[r_ab:r_ab + tb, :tb * N]        # (TB, TB*N) block-diag a_row
    cw = slab_ref[r_cw:r_cw + F, :2 * H]             # (F, 2H)  [cwz@wgz | cwh@wgh]
    w1 = slab_ref[r_w1:r_w1 + H, :H]                 # (H, H)   linear1 with eval-BN folded
    gate_b = slab_ref[r_vec:r_vec + 1, :2 * H]       # (1, 2H)  folded gate biases
    b1 = slab_ref[r_vec + 1:r_vec + 2, :H]           # (1, H)
    b2 = slab_ref[r_vec + 1:r_vec + 2, H:H + 1]      # (1, 1)
    w2row = slab_ref[r_vec + 2:r_vec + 3, :H]        # (1, H)   linear2 weight, transposed

    x = x_ref[...]                                   # (TB*N, F) flattened timestep chunk

    # Adjacency-row contraction FIRST (no (N, 2H) intermediate), then folded gates.
    ax = jnp.dot(a_blk, x, preferred_element_type=jnp.float32)            # (TB, F)
    g = jnp.dot(ax, cw, preferred_element_type=jnp.float32) + gate_b      # (TB, 2H)

    # --- TGCN cell with H_prev == 0 (reset gate dead) -------------------------
    z = jax.nn.sigmoid(g[:, :H])       # update gate
    h_tilde = jnp.tanh(g[:, H:])       # candidate state
    h = (1.0 - z) * h_tilde            # == Z*H0 + (1-Z)*H_tilde with H0 == 0

    # --- head: relu -> linear1(+BN) -> relu -> linear2 ------------------------
    y = jnp.maximum(h, 0.0)            # relu; dropout output is dead code
    y = jnp.dot(y, w1, preferred_element_type=jnp.float32) + b1
    y = jnp.maximum(y, 0.0)
    # final (H -> 1) projection as VPU mul + lane reduce (no MXU round trip)
    out_ref[...] = jnp.sum(y * w2row, axis=-1, keepdims=True) + b2        # (TB, 1)


def gcn_normalized_adjacency(edge_index, n):
    """Dense D^{-1/2}(A + I)D^{-1/2} following PyG gcn_norm (add_self_loops=True)."""
    src, dst = edge_index[0], edge_index[1]
    A = jnp.zeros((n, n), jnp.float32).at[dst, src].add(1.0)
    A = A + jnp.eye(n, dtype=jnp.float32)
    deg = A.sum(axis=1)
    d_inv_sqrt = jax.lax.rsqrt(deg)
    return A * d_inv_sqrt[:, None] * d_inv_sqrt[None, :]


def pack_params(params, a_row, feat, hidden, n_nodes, tb=TB, *, h_prev_is_zero=True):
    """Host-side, once-per-model folding + packing into a single f32 slab."""
    if not h_prev_is_zero:
        raise NotImplementedError(
            "packed kernel assumes H_prev == 0 (reset gate, Z*H0 and the hidden-half "
            "of the gate weights are folded away); re-derive the folds to carry state")
    assert hidden % 8 == 0, "hidden must be a multiple of 8 for aligned slab slices"
    assert 0 <= OUT_ROW < n_nodes

    H = hidden
    r_ab, r_cw, r_w1, r_vec, rows, lanes = _slab_layout(feat, H, n_nodes, tb)
    hi = jax.lax.Precision.HIGHEST   # one-off host folds: keep them exact

    cw, cb = params["cw"], params["cb"]        # (3, F, H), (3, 1, H)
    lw, lb = params["lw"], params["lb"]        # (3, 2H, H), (3, 1, H)

    # Only the conv-half (first H rows) of the gate linears matters (H_prev == 0),
    # and the reset gate (index 1) is entirely dead.
    wg_z = lw[0][:H, :]
    wg_h = lw[2][:H, :]
    cw_fold = jnp.concatenate(
        [jnp.dot(cw[0], wg_z, precision=hi), jnp.dot(cw[2], wg_h, precision=hi)], axis=1)
    gate_b = jnp.concatenate(
        [jnp.dot(cb[0], wg_z, precision=hi) + lb[0],
         jnp.dot(cb[2], wg_h, precision=hi) + lb[2]], axis=1)

    # Fold eval-mode BatchNorm1d into linear1.
    s = params["gamma"] * jax.lax.rsqrt(params["var"] + BN_EPS)            # (1, H)
    w1_fold = params["w1"] * s                                             # (H, H)
    b1_fold = (params["b1"] - params["mean"]) * s + params["beta"]         # (1, H)

    # Block-diagonal replication of the single adjacency row (one per timestep slot).
    a_blk = jnp.kron(jnp.eye(tb, dtype=jnp.float32),
                     a_row.reshape(1, n_nodes))                            # (TB, TB*N)

    slab = jnp.zeros((rows, lanes), jnp.float32)
    slab = slab.at[r_ab:r_ab + tb, :tb * n_nodes].set(a_blk)
    slab = slab.at[r_cw:r_cw + feat, :2 * H].set(cw_fold)
    slab = slab.at[r_w1:r_w1 + H, :H].set(w1_fold)
    slab = slab.at[r_vec, :2 * H].set(gate_b[0])
    slab = slab.at[r_vec + 1, :H].set(b1_fold[0])
    slab = slab.at[r_vec + 1, H].set(params["b2"][0, 0])
    slab = slab.at[r_vec + 2, :H].set(params["w2"][:, 0])
    return slab


def recurrent_gcn_forward(x_seq, slab, *, feat, hidden, n_nodes, tb=TB):
    """Batched steady-state forward.

    x_seq: (T, N, F) node features for T independent timesteps (T = 1 reproduces a
    single module forward).  Returns (T, 1); row t equals forward(x_seq[t], A)[2].
    """
    T = x_seq.shape[0]
    t_pad = pl.cdiv(T, tb) * tb
    if t_pad != T:
        x_seq = jnp.concatenate(
            [x_seq, jnp.zeros((t_pad - T, n_nodes, feat), x_seq.dtype)], axis=0)
    x2d = x_seq.reshape(t_pad * n_nodes, feat)   # row-major flatten: (t, n) -> t*N + n

    _, _, _, _, rows, lanes = _slab_layout(feat, hidden, n_nodes, tb)
    kernel = functools.partial(
        recurrent_gcn_kernel, feat=feat, hidden=hidden, n_nodes=n_nodes, tb=tb)

    out = pl.pallas_call(
        kernel,
        out_shape=jax.ShapeDtypeStruct((t_pad, 1), jnp.float32),
        grid_spec=pltpu.PrefetchScalarGridSpec(
            num_scalar_prefetch=0,
            grid=(t_pad // tb,),
            in_specs=[
                pl.BlockSpec((tb * n_nodes, feat), lambda i: (i, 0)),  # per-chunk X
                pl.BlockSpec((rows, lanes), lambda i: (0, 0)),         # resident param slab
            ],
            out_specs=pl.BlockSpec((tb, 1), lambda i: (i, 0)),
        ),
        compiler_params=pltpu.CompilerParams(
            dimension_semantics=("parallel",)),  # shards chunks across v7x's 2 TCs
    )(x2d, slab)
    return out[:T]


def reference_forward(x, edge_index, params, n):
    """Pure-JAX reference implementing the original (unfolded) forward for one step."""
    A = gcn_normalized_adjacency(edge_index, n)
    H = params["w1"].shape[0]
    H0 = jnp.zeros((n, H), jnp.float32)

    def conv(i):
        return A @ (x @ params["cw"][i]) + params["cb"][i]

    def gate(i, c, h):
        return jnp.concatenate([c, h], axis=1) @ params["lw"][i] + params["lb"][i]

    Z = jax.nn.sigmoid(gate(0, conv(0), H0))
    R = jax.nn.sigmoid(gate(1, conv(1), H0))
    Ht = jnp.tanh(gate(2, conv(2), H0 * R))
    Hn = Z * H0 + (1.0 - Z) * Ht
    y = jnp.maximum(Hn, 0.0)
    y = y @ params["w1"] + params["b1"]
    y = (y - params["mean"]) * jax.lax.rsqrt(params["var"] + BN_EPS) * params["gamma"] \
        + params["beta"]
    y = jnp.maximum(y, 0.0)
    y = y @ params["w2"] + params["b2"]
    return y[2]


def init_params(key, node_features, hidden):
    ks = jax.random.split(key, 10)
    scale = 0.1
    return {
        # TGCN (recurrent1)
        "cw": scale * jax.random.normal(ks[0], (3, node_features, hidden), jnp.float32),
        "cb": scale * jax.random.normal(ks[1], (3, 1, hidden), jnp.float32),
        "lw": scale * jax.random.normal(ks[2], (3, 2 * hidden, hidden), jnp.float32),
        "lb": scale * jax.random.normal(ks[3], (3, 1, hidden), jnp.float32),
        # linear1
        "w1": scale * jax.random.normal(ks[4], (hidden, hidden), jnp.float32),
        "b1": scale * jax.random.normal(ks[5], (1, hidden), jnp.float32),
        # BatchNorm1d (eval-mode running stats)
        "gamma": jnp.ones((1, hidden), jnp.float32),
        "beta": jnp.zeros((1, hidden), jnp.float32),
        "mean": scale * jax.random.normal(ks[6], (1, hidden), jnp.float32),
        "var": jnp.abs(jax.random.normal(ks[7], (1, hidden), jnp.float32)) + 1.0,
        # linear2
        "w2": scale * jax.random.normal(ks[8], (hidden, 1), jnp.float32),
        "b2": scale * jax.random.normal(ks[9], (1, 1), jnp.float32),
    }


if __name__ == "__main__":
    N_NODES = 16
    NODE_FEATURES = 4
    HIDDEN = 32
    T_STEPS = 8   # batch of independent timesteps amortizing launch + slab DMA

    key = jax.random.PRNGKey(0)
    kx, kp = jax.random.split(key)

    # node features for T timesteps: (T, N, F)
    x_seq = jax.random.normal(kx, (T_STEPS, N_NODES, NODE_FEATURES), jnp.float32)

    # undirected ring graph: edge_index (2, 2N), int32
    idx = jnp.arange(N_NODES, dtype=jnp.int32)
    nxt = (idx + 1) % N_NODES
    edge_index = jnp.stack(
        [jnp.concatenate([idx, nxt]), jnp.concatenate([nxt, idx])], axis=0)

    params = init_params(kp, NODE_FEATURES, HIDDEN)

    # Hoisted once per (static graph, static model): adjacency row + param folding.
    a_hat = gcn_normalized_adjacency(edge_index, N_NODES)
    a_row = a_hat[OUT_ROW]                                # (N,)
    slab = pack_params(params, a_row, NODE_FEATURES, HIDDEN, N_NODES)

    fwd = jax.jit(functools.partial(
        recurrent_gcn_forward, feat=NODE_FEATURES, hidden=HIDDEN, n_nodes=N_NODES))
    out = fwd(x_seq, slab)                                # (T, 1)
    jax.block_until_ready(out)

    assert out.shape == (T_STEPS, 1)
    ref = jnp.stack([reference_forward(x_seq[t], edge_index, params, N_NODES)
                     for t in range(T_STEPS)], axis=0)    # (T, 1)
    assert jnp.allclose(out, ref, rtol=1e-3, atol=1e-4), (out, ref)
    print("KERNEL_OK")
</pallas_src>

<mosaic_0001>
module attributes {stable_mosaic.version = 11 : i64} {
  func.func @recurrent_gcn_kernel(%arg0: i32, %arg1: memref<128x4xf32, #tpu.memory_space<vmem>>, %arg2: memref<56x128xf32, #tpu.memory_space<vmem>>, %arg3: memref<8x1xf32, #tpu.memory_space<vmem>>) attributes {dimension_semantics = [#tpu.dimension_semantics<parallel>], iteration_bounds = array<i64: 1>, scalar_prefetch = 0 : i64, scratch_operands = 0 : i64, tpu.core_type = #tpu.core_type<tc>, window_params = [{transform_indices = @transform_0, window_bounds = array<i64: 128, 4>}, {pipeline_mode = #tpu.pipeline_mode<synchronous>, transform_indices = @transform_1, window_bounds = array<i64: 56, 128>}, {transform_indices = @transform_2, window_bounds = array<i64: 8, 1>}]} {
    %c0 = arith.constant 0 : index
    %c0_0 = arith.constant 0 : index
    %0 = vector.load %arg2[%c0, %c0_0] : memref<56x128xf32, #tpu.memory_space<vmem>>, vector<8x128xf32>
    %c8 = arith.constant 8 : index
    %c0_1 = arith.constant 0 : index
    %1 = vector.load %arg2[%c8, %c0_1] : memref<56x128xf32, #tpu.memory_space<vmem>>, vector<4x64xf32>
    %c16 = arith.constant 16 : index
    %c0_2 = arith.constant 0 : index
    %2 = vector.load %arg2[%c16, %c0_2] : memref<56x128xf32, #tpu.memory_space<vmem>>, vector<32x32xf32>
    %c48 = arith.constant 48 : index
    %c0_3 = arith.constant 0 : index
    %3 = vector.load %arg2[%c48, %c0_3] : memref<56x128xf32, #tpu.memory_space<vmem>>, vector<1x64xf32>
    %c49 = arith.constant 49 : index
    %c0_4 = arith.constant 0 : index
    %4 = vector.load %arg2[%c49, %c0_4] : memref<56x128xf32, #tpu.memory_space<vmem>>, vector<1x32xf32>
    %c49_5 = arith.constant 49 : index
    %c32 = arith.constant 32 : index
    %5 = vector.load %arg2[%c49_5, %c32] : memref<56x128xf32, #tpu.memory_space<vmem>>, vector<1x1xf32>
    %c50 = arith.constant 50 : index
    %c0_6 = arith.constant 0 : index
    %6 = vector.load %arg2[%c50, %c0_6] : memref<56x128xf32, #tpu.memory_space<vmem>>, vector<1x32xf32>
    %c0_7 = arith.constant 0 : index
    %c0_8 = arith.constant 0 : index
    %7 = vector.load %arg1[%c0_7, %c0_8] : memref<128x4xf32, #tpu.memory_space<vmem>>, vector<128x4xf32>
    %cst = arith.constant dense<0.000000e+00> : vector<8x4xf32>
    %8 = tpu.matmul %0, %7, %cst {dimension_numbers = #tpu.dot_dimension_numbers<[1], [0], [0], [1], [0, 0, 1, 1], [], []>} : vector<8x128xf32>, vector<128x4xf32>, vector<8x4xf32> -> vector<8x4xf32>
    %cst_9 = arith.constant dense<0.000000e+00> : vector<8x64xf32>
    %9 = tpu.matmul %8, %1, %cst_9 {dimension_numbers = #tpu.dot_dimension_numbers<[1], [0], [0], [1], [0, 0, 1, 1], [], []>} : vector<8x4xf32>, vector<4x64xf32>, vector<8x64xf32> -> vector<8x64xf32>
    %10 = vector.broadcast %3 : vector<1x64xf32> to vector<8x64xf32>
    %11 = arith.addf %9, %10 : vector<8x64xf32>
    %12 = vector.extract_strided_slice %11 {offsets = [0, 0], sizes = [8, 32], strides = [1, 1]} : vector<8x64xf32> to vector<8x32xf32>
    %13 = arith.negf %12 : vector<8x32xf32>
    %14 = math.exp %13 : vector<8x32xf32>
    %cst_10 = arith.constant 1.000000e+00 : f32
    %15 = vector.broadcast %cst_10 : f32 to vector<8x32xf32>
    %16 = arith.addf %15, %14 : vector<8x32xf32>
    %17 = arith.divf %15, %16 : vector<8x32xf32>
    %18 = vector.extract_strided_slice %11 {offsets = [0, 32], sizes = [8, 32], strides = [1, 1]} : vector<8x64xf32> to vector<8x32xf32>
    %19 = math.tanh %18 : vector<8x32xf32>
    %cst_11 = arith.constant 1.000000e+00 : f32
    %20 = vector.broadcast %cst_11 : f32 to vector<8x32xf32>
    %21 = arith.subf %20, %17 : vector<8x32xf32>
    %22 = arith.mulf %21, %19 : vector<8x32xf32>
    %cst_12 = arith.constant 0.000000e+00 : f32
    %23 = vector.broadcast %cst_12 : f32 to vector<8x32xf32>
    %24 = arith.maximumf %22, %23 : vector<8x32xf32>
    %cst_13 = arith.constant dense<0.000000e+00> : vector<8x32xf32>
    %25 = tpu.matmul %24, %2, %cst_13 {dimension_numbers = #tpu.dot_dimension_numbers<[1], [0], [0], [1], [0, 0, 1, 1], [], []>} : vector<8x32xf32>, vector<32x32xf32>, vector<8x32xf32> -> vector<8x32xf32>
    %26 = vector.broadcast %4 : vector<1x32xf32> to vector<8x32xf32>
    %27 = arith.addf %25, %26 : vector<8x32xf32>
    %cst_14 = arith.constant 0.000000e+00 : f32
    %28 = vector.broadcast %cst_14 : f32 to vector<8x32xf32>
    %29 = arith.maximumf %27, %28 : vector<8x32xf32>
    %30 = vector.broadcast %6 : vector<1x32xf32> to vector<8x32xf32>
    %31 = arith.mulf %29, %30 : vector<8x32xf32>
    %cst_15 = arith.constant dense<0.000000e+00> : vector<8xf32>
    %32 = vector.multi_reduction <add>, %31, %cst_15 [1] : vector<8x32xf32> to vector<8xf32>
    %33 = vector.shape_cast %32 : vector<8xf32> to vector<8x1xf32>
    %34 = vector.broadcast %5 : vector<1x1xf32> to vector<8x1xf32>
    %35 = arith.addf %33, %34 : vector<8x1xf32>
    %c0_16 = arith.constant 0 : index
    %c0_17 = arith.constant 0 : index
    %36 = vector.load %arg3[%c0_16, %c0_17] : memref<8x1xf32, #tpu.memory_space<vmem>>, vector<8x1xf32>
    tpu.vector_store %arg3[%c0_16, %c0_17], %35 {strides = array<i32>} : memref<8x1xf32, #tpu.memory_space<vmem>>, vector<8x1xf32>,
    return
  }
  func.func @transform_0(%arg0: i32) -> (i32, i32) {
    %c0_i32 = arith.constant 0 : i32
    %c0_i32_0 = arith.constant 0 : i32
    return %arg0, %c0_i32 : i32, i32
  }
  func.func @transform_1(%arg0: i32) -> (i32, i32) {
    %c0_i32 = arith.constant 0 : i32
    %c0_i32_0 = arith.constant 0 : i32
    %c0_i32_1 = arith.constant 0 : i32
    return %c0_i32, %c0_i32_0 : i32, i32
  }
  func.func @transform_2(%arg0: i32) -> (i32, i32) {
    %c0_i32 = arith.constant 0 : i32
    %c0_i32_0 = arith.constant 0 : i32
    return %arg0, %c0_i32 : i32, i32
  }
}

</mosaic_0001>

<llo_original>
// kernel: recurrent_gcn_forward.1
$region0: #{recurrent_gcn_forward.1}
  #allocation0 [shape = 'u32[]', space=smem, size = 0x4, offset = 0x4, fixed_abs, tag = 'smem constant byte address 0x4 - core index']
  #allocation1 [shape = 'u32[72,128]{1,0:T(1,128)}', space=vmem, size = 0x9000, scoped, tag = 'internal scratch']
  %s0 = inlined_call_operand.vmem [shape: f32[128,4], index: 0, kind: input, shape index: {}]
  %s1 = inlined_call_operand.vmem [shape: f32[56,128], index: 1, kind: input, shape index: {}]
  %s2 = inlined_call_operand.vmem [shape: f32[8,1], index: 2, kind: output, shape index: {}]
  %s3 = sld [smem:[#allocation0]]
  $region18: #{recurrent_gcn_forward.1} parent=0
    _
  %s5 = ssub.s32 1, %s3
  %s6 = scalar_select 0, %s5, %s3
  // Predicated region
  $region2: #{recurrent_gcn_forward.1} parent=0 // pred_check
    _
  $region3: #{recurrent_gcn_forward.1} parent=0 // pred_check_branch
    %8 = sbr.rel (0) target = $region5
  $region4: #{recurrent_gcn_forward.1} parent=0 // pred_region
    _
  $region5: #{recurrent_gcn_forward.1} parent=0 // pred_fallthru
    _
  // Predicated region
  $region6: #{recurrent_gcn_forward.1} parent=0 // pred_check
    _
  $region7: #{recurrent_gcn_forward.1} parent=0 // pred_check_branch
    %10 = sbr.rel (0) target = $region9
  $region8: #{recurrent_gcn_forward.1} parent=0 // pred_region
    _
  $region9: #{recurrent_gcn_forward.1} parent=0 // pred_fallthru
    _
  %v11 = vld [vmem:[%s1] sm:$0xff]
  %v12 = vld [vmem:[%s1 + $0x8] sm:$0xf]
  %v13 = vld [vmem:[%s1 + $0x10] sm:$0xff]
  %v14 = vld [vmem:[%s1 + $0x18] sm:$0xff]
  %v15 = vld [vmem:[%s1 + $0x20] sm:$0xff]
  %v16 = vld [vmem:[%s1 + $0x28] sm:$0xff]
  %v17 = vld [vmem:[%s1 + $0x30] sm:$0x1]
  %v18 = vld [vmem:[%s1 + $0x31] sm:$0x1]
  %v19 = vld [vmem:[%s1 + $0x32] sm:$0x1]
  %v20 = vld [vmem:[%s0] sm:$0xff]
  %v21 = vld [vmem:[%s0 + $0x8] sm:$0xff]
  %v22 = vld [vmem:[%s0 + $0x10] sm:$0xff]
  %v23 = vld [vmem:[%s0 + $0x18] sm:$0xff]
  %v24 = vld [vmem:[%s0 + $0x20] sm:$0xff]
  %v25 = vld [vmem:[%s0 + $0x28] sm:$0xff]
  %v26 = vld [vmem:[%s0 + $0x30] sm:$0xff]
  %v27 = vld [vmem:[%s0 + $0x38] sm:$0xff]
  %v28 = vld [vmem:[%s0 + $0x40] sm:$0xff]
  %v29 = vld [vmem:[%s0 + $0x48] sm:$0xff]
  %v30 = vld [vmem:[%s0 + $0x50] sm:$0xff]
  %v31 = vld [vmem:[%s0 + $0x58] sm:$0xff]
  %v32 = vld [vmem:[%s0 + $0x60] sm:$0xff]
  %v33 = vld [vmem:[%s0 + $0x68] sm:$0xff]
  %v34 = vld [vmem:[%s0 + $0x70] sm:$0xff]
  %v35 = vld [vmem:[%s0 + $0x78] sm:$0xff]
  %36 = vmatpush.msra.mxu0 %v35
  %37 = vmatpush.msra.mxu0 %v34
  %38 = vmatpush.msra.mxu0 %v33
  %39 = vmatpush.msra.mxu0 %v32
  %40 = vmatpush.msra.mxu0 %v31
  %41 = vmatpush.msra.mxu0 %v30
  %42 = vmatpush.msra.mxu0 %v29
  %43 = vmatpush.msra.mxu0 %v28
  %44 = vmatpush.msra.mxu0 %v27
  %45 = vmatpush.msra.mxu0 %v26
  %46 = vmatpush.msra.mxu0 %v25
  %47 = vmatpush.msra.mxu0 %v24
  %48 = vmatpush.msra.mxu0 %v23
  %49 = vmatpush.msra.mxu0 %v22
  %50 = vmatpush.msra.mxu0 %v21
  %51 = vmatpush.msra.mxu0 %v20
  %52 = vmatmul.f32.gmra.mxu0 %v11
  %v53 = vpop.f32.mrf.mxu0
  %v54 = vadd.f32 0.0, %v53
  %55 = vdwg.mxu0
  %v56 = vperm.slane %v17, 0
  %vm57 = vcmask 31744
  %v59 = vsel %vm57, %v54, 0
  %vm61 = vcmask 1043456
  %v63 = vsel %vm61, %v12, 0
  %65 = vmatpush.msra.mxu0 0.0
  %66 = vmatpush.msra.mxu0 0.0
  %67 = vmatpush.msra.mxu0 0.0
  %68 = vmatpush.msra.mxu0 0.0
  %69 = vmatpush.msra.mxu0 0.0
  %70 = vmatpush.msra.mxu0 0.0
  %71 = vmatpush.msra.mxu0 0.0
  %72 = vmatpush.msra.mxu0 0.0
  %73 = vmatpush.msra.mxu0 0.0
  %74 = vmatpush.msra.mxu0 0.0
  %75 = vmatpush.msra.mxu0 0.0
  %76 = vmatpush.msra.mxu0 0.0
  %77 = vmatpush.msra.mxu0 0.0
  %78 = vmatpush.msra.mxu0 0.0
  %79 = vmatpush.msra.mxu0 0.0
  %80 = vmatpush.msra.mxu0 %v63
  %81 = vmatmul.f32.gmra.mxu0 %v59
  %v82 = vpop.f32.mrf.mxu0
  %v83 = vadd.f32 %v56, %v82
  %84 = vdwg.mxu0
  %v85 = vxor.u32 %v83, 2147483648
  %v86 = vmul.f32 %v85, 1.442695
  %v87 = vpow.pop %v86
  %v88 = vadd.f32 %v87, 1.0
  %v89 = vrcp.pop %v88
  %v90 = vmul.f32 %v88, %v89
  %v91 = vsub.f32 1.0, %v90
  %v92 = vmul.f32 %v89, %v91
  %v93 = vadd.f32 %v89, %v92
  %vm94 = vweird.f32 %v88
  %vm95 = vweird.f32 %v89
  %vm96 = vmor %vm94, %vm95
  %v97 = vsel %vm96, %v89, %v93
  %v98 = vand.u32 2147483647, %v88
  %vm99 = vcmp.eq.f32.partialorder %v98, 8.507059e+37
  %v100 = vand.u32 %v88, 2147483648
  %v101 = vor.u32 1.1754944e-38, %v100
  %v102 = vsel %vm99, %v101, %v97
  %v103 = vmul.f32 1.0, %v102
  %v104 = vtanh.pop %v83
  %v105 = vsub.f32 1.0, %v103
  %107 = vrot.lane.b32.xlu0 %v104, 96
  %v108 = vpop.permute.xlu0 %107
  %v110 = vmul.f32 %v105, %v108
  %v111 = vmax.f32 %v110, 0.0
  %v112 = vperm.slane %v18, 0
  %vm113 = vcmask 261120
  %v115 = vsel %vm113, %v111, 0
  %117 = vmatpush.msra.mxu0 0.0
  %118 = vmatpush.msra.mxu0 0.0
  %119 = vmatpush.msra.mxu0 0.0
  %120 = vmatpush.msra.mxu0 0.0
  %121 = vmatpush.msra.mxu0 0.0
  %122 = vmatpush.msra.mxu0 0.0
  %123 = vmatpush.msra.mxu0 0.0
  %124 = vmatpush.msra.mxu0 0.0
  %125 = vmatpush.msra.mxu0 0.0
  %126 = vmatpush.msra.mxu0 0.0
  %127 = vmatpush.msra.mxu0 0.0
  %128 = vmatpush.msra.mxu0 0.0
  %129 = vmatpush.msra.mxu0 %v16
  %130 = vmatpush.msra.mxu0 %v15
  %131 = vmatpush.msra.mxu0 %v14
  %132 = vmatpush.msra.mxu0 %v13
  %133 = vmatmul.f32.gmra.mxu0 %v115
  %v134 = vpop.f32.mrf.mxu0
  %v135 = vadd.f32 %v112, %v134
  %136 = vdwg.mxu0
  %v137 = vmax.f32 %v135, 0.0
  %v138 = vperm.slane %v19, 0
  %v139 = vmul.f32 %v137, %v138
  %v140 = vsel %vm113, %v139, 0.0
  %141 = vadd.xlane.f32.xlu0 %v140
  %v142 = vpop.xlane.xlu0 %141
  %v143 = vadd.f32 %v142, %v112
  %145 = vrot.lane.b32.xlu0 %v143, 96
  %v146 = vpop.permute.xlu0 %145
  %vm148 = vcmask 7168
  %149 = vst.msk [vmem:[%s2] sm:$0xff] %vm148, %v146
  // Predicated region
  $region10: #{recurrent_gcn_forward.1} parent=0 // pred_check
    _
  $region11: #{recurrent_gcn_forward.1} parent=0 // pred_check_branch
    %151 = sbr.rel (0) target = $region13
  $region12: #{recurrent_gcn_forward.1} parent=0 // pred_region
    _
  $region13: #{recurrent_gcn_forward.1} parent=0 // pred_fallthru
    _
  // Predicated region
  $region14: #{recurrent_gcn_forward.1} parent=0 // pred_check
    _
  $region15: #{recurrent_gcn_forward.1} parent=0 // pred_check_branch
    %153 = sbr.rel (0) target = $region17
  $region16: #{recurrent_gcn_forward.1} parent=0 // pred_region
    _
  $region17: #{recurrent_gcn_forward.1} parent=0 // pred_fallthru
    _

</llo_original>
